<compile_context>
chip_gen: v6e
topology: v6e:2x2x1
jax: 0.10.0
libtpu: 0.0.40
codegen_flags: <defaults>
</compile_context>

<pallas_src>
import numpy as np
import jax
import jax.numpy as jnp
from jax import lax
from jax.experimental import pallas as pl
from jax.experimental.pallas import tpu as pltpu


def _round_up(x, m):
    return (x + m - 1) // m * m


def _block_spec(shape, index_map, buffers=None):
    """BlockSpec helper; `buffers` requests an explicit pipeline depth."""
    if buffers is None:
        return pl.BlockSpec(shape, index_map)
    try:
        return pl.BlockSpec(shape, index_map, pipeline_mode=pl.Buffered(buffers))
    except TypeError:  # older jax without the pipeline_mode kwarg
        return pl.BlockSpec(shape, index_map)


def _zsc_kernel(x_ref, wlin_ref, blin_ref, wcls_ref, out_ref, h_acc):
    """K-tiled linear -> +bias -> L2 normalize (rsqrt) -> fused classifier matmul."""
    k = pl.program_id(1)

    @pl.when(k == 0)
    def _():
        h_acc[...] = jnp.zeros_like(h_acc)

    # linear: partial h += x_k @ W_lin^T_k   (bf16 inputs, f32 accumulation)
    h_acc[...] += jnp.dot(x_ref[...], wlin_ref[...],
                          preferred_element_type=jnp.float32)

    @pl.when(k == pl.num_programs(1) - 1)
    def _():
        h = h_acc[...] + blin_ref[...]
        # F.normalize(h, p=2, dim=1) with torch eps=1e-12: h * rsqrt(max(ss, eps^2))
        ss = jnp.sum(h * h, axis=-1, keepdims=True)
        h = h * lax.rsqrt(jnp.maximum(ss, 1e-24))
        # single fused classifier matmul; W_comb already carries T / alpha / scatter
        out_ref[...] = jnp.dot(h.astype(wcls_ref.dtype), wcls_ref[...],
                               preferred_element_type=jnp.float32
                               ).astype(out_ref.dtype)


def prepare_zsc_weights(w_lin, b_lin, det_w, vproto,
                        unseen_cls, seen_cls, unused_cls,
                        *, norm_temperature=50.0, alpha=0.0, max_tk=2048):
    """Fold the per-class epilogue into one classifier weight; pad & cast.

    Call ONCE at init (weights/config are static) and reuse across forwards.
      w_lin:  [D, IN]   nn.Linear weight (torch layout),  b_lin: [D]
      det_w:  [D, C+1]  detection weight (bg col appended, col-normalized)
      vproto: [C, D]    visual prototype (not normalized, as in the module)
    """
    D, IN = w_lin.shape
    C1 = det_w.shape[1]
    C = vproto.shape[0]

    # --- encode the class-index scatter as per-column scale / alpha vectors ---
    scale = jnp.ones((C1,), jnp.float32)
    for idx in (unseen_cls, seen_cls, unused_cls):
        scale = scale.at[idx].set(norm_temperature)
    amask = jnp.zeros((C1,), jnp.float32).at[unseen_cls].set(
        norm_temperature * alpha)

    # visual prototype -> [D, C1] with zero background column(s)
    vproto_t = jnp.concatenate(
        [vproto.T.astype(jnp.float32), jnp.zeros((D, C1 - C), jnp.float32)],
        axis=1)

    # fold the per-column affine into ONE classifier weight  [D, C1]
    w_comb = det_w.astype(jnp.float32) * scale[None, :] + vproto_t * amask[None, :]

    # --- pad to MXU/lane-friendly shapes, pick the K tile ---------------------
    TK = min(max_tk, _round_up(IN, 128))
    INp = _round_up(IN, TK)
    Dp = _round_up(D, 128)
    C1p = _round_up(C1, 128)
    # TODO(synk): on v6e/v7x pad Dp/C1p to multiples of 256 (2x256x256 MXU) when
    # they land on an odd multiple of 128; 128 padding is already optimal on v5e.

    wlin_t = jnp.zeros((INp, Dp), jnp.bfloat16).at[:IN, :D].set(
        w_lin.T.astype(jnp.bfloat16))
    blin = jnp.zeros((1, Dp), jnp.float32).at[0, :D].set(
        b_lin.astype(jnp.float32))
    wcls = jnp.zeros((Dp, C1p), jnp.bfloat16).at[:D, :C1].set(
        w_comb.astype(jnp.bfloat16))

    return {"wlin_t": wlin_t, "blin": blin, "wcls": wcls,
            "dims": (IN, D, C1, INp, Dp, C1p, TK)}


def zero_shot_classifier_fwd(x, prep, *, block_m=None, out_dtype=jnp.float32,
                             cls_bias=None):
    """Run the fused forward pass.  x: [N, IN] f32 ROI features -> [N, C+1]."""
    IN, D, C1, INp, Dp, C1p, TK = prep["dims"]
    wlin_t, blin, wcls = prep["wlin_t"], prep["blin"], prep["wcls"]
    N = x.shape[0]
    kt = INp // TK

    # --- generation-aware VMEM budget and batch tile ---------------------------
    try:
        vmem_cap = int(pltpu.get_tpu_info().vmem_capacity_bytes)
    except Exception:  # interpreter / older jax fallback
        vmem_cap = 128 * 1024 * 1024
    small_vmem = vmem_cap <= 64 * 1024 * 1024   # v7x: 64 MiB per TC, 2 TCs

    if block_m is None:
        # v7x: smaller tiles -> >=2 tiles per core (megacore + pipelining);
        # v5e/v6e: single TC, 0.35us/step overhead -> biggest tile that fits.
        block_m = 256 if small_vmem else 512
    TM = min(block_m, _round_up(N, 16))          # bf16 sublane pack: multiple of 16
    Np = _round_up(N, TM)

    out_bytes = np.dtype(out_dtype).itemsize
    wlin_bufs = 1 if kt == 1 else 2
    vmem_need = (2 * TM * TK * 2                 # x tile, double-buffered (bf16)
                 + wlin_bufs * TK * Dp * 2       # W_lin^T tile (bf16)
                 + 8 * Dp * 4                    # bias (f32, sublane-padded)
                 + Dp * C1p * 2                  # fused classifier weight (bf16)
                 + 2 * TM * C1p * out_bytes      # out tile, double-buffered
                 + TM * Dp * 4                   # h accumulator scratch (f32)
                 + 2 * TM * Dp * 4)              # normalize / cast headroom
    vmem_limit = min(int(vmem_cap * 0.85),
                     max(32 * 1024 * 1024, int(vmem_need * 3 // 2)))

    # --- pad / cast the streamed input -----------------------------------------
    xp = jnp.zeros((Np, INp), jnp.bfloat16).at[:N, :IN].set(
        x.astype(jnp.bfloat16))

    flops = 2 * Np * (INp * Dp + Dp * C1p)
    bytes_accessed = (xp.size * 2 + wlin_t.size * 2 + blin.size * 4
                      + wcls.size * 2 + Np * C1p * out_bytes)
    cost = pl.CostEstimate(flops=flops, transcendentals=Np,
                           bytes_accessed=bytes_accessed)

    in_specs = [
        _block_spec((TM, TK), lambda i, k: (i, k)),                 # x (pipelined)
        _block_spec((TK, Dp), lambda i, k: (k, 0),
                    buffers=1 if kt == 1 else 2),                   # W_lin^T
        _block_spec((1, Dp), lambda i, k: (0, 0), buffers=1),       # bias (resident)
        _block_spec((Dp, C1p), lambda i, k: (0, 0), buffers=1),     # W_comb (resident)
    ]
    out_spec = pl.BlockSpec((TM, C1p), lambda i, k: (i, 0))

    out = pl.pallas_call(
        _zsc_kernel,
        out_shape=jax.ShapeDtypeStruct((Np, C1p), out_dtype),
        grid_spec=pltpu.PrefetchScalarGridSpec(
            num_scalar_prefetch=0,
            grid=(Np // TM, kt),
            in_specs=in_specs,
            out_specs=out_spec,
            scratch_shapes=[pltpu.VMEM((TM, Dp), jnp.float32)],
        ),
        compiler_params=pltpu.CompilerParams(
            dimension_semantics=("parallel", "arbitrary"),
            vmem_limit_bytes=vmem_limit),
        cost_estimate=cost,
    )(xp, wlin_t, blin, wcls)

    out = out[:N, :C1]
    if cls_bias is not None:      # use_bias < 0 path: scalar bias added post-scale
        out = out + jnp.asarray(cls_bias, out.dtype)
    # TODO(synk): the optional runtime `classifier` override reuses this kernel
    # by folding the (column-normalized) override weight into wcls instead.
    return out


def zero_shot_classifier(x, w_lin, b_lin, det_w, vproto,
                         unseen_cls, seen_cls, unused_cls,
                         *, norm_temperature=50.0, alpha=0.0,
                         block_m=None, out_dtype=jnp.float32):
    """Convenience wrapper (demo): real usage hoists prepare_zsc_weights to init."""
    prep = prepare_zsc_weights(w_lin, b_lin, det_w, vproto,
                               unseen_cls, seen_cls, unused_cls,
                               norm_temperature=norm_temperature, alpha=alpha)
    return zero_shot_classifier_fwd(x, prep, block_m=block_m, out_dtype=out_dtype)


if __name__ == "__main__":
    # ---- small synthetic configuration ---------------------------------------
    N, IN, D, C = 16, 32, 64, 15
    C1 = C + 1
    norm_temperature, alpha = 50.0, 0.25
    unseen_cls = jnp.arange(0, 5)
    seen_cls = jnp.arange(5, 10)
    unused_cls = jnp.arange(10, 15)

    key = jax.random.PRNGKey(0)
    k_x, k_wl, k_bl, k_det, k_vp = jax.random.split(key, 5)

    x = jax.random.normal(k_x, (N, IN), jnp.float32)
    # nn.Linear(IN, D): weight [D, IN], bias [D]
    w_lin = jax.random.normal(k_wl, (D, IN), jnp.float32) * 0.02
    b_lin = jax.random.normal(k_bl, (D,), jnp.float32) * 0.01
    # detection_weight: [D, C] + zero background column, L2-normalized per column
    det_w = jax.random.normal(k_det, (D, C), jnp.float32) * 0.01
    det_w = jnp.concatenate([det_w, jnp.zeros((D, 1), jnp.float32)], axis=1)
    det_w = det_w / jnp.maximum(
        jnp.linalg.norm(det_w, axis=0, keepdims=True), 1e-12)
    # visual_prototype: [C, D] (not normalized in the reference module)
    vproto = jax.random.normal(k_vp, (C, D), jnp.float32) * 0.01

    prep = prepare_zsc_weights(x_lin := w_lin, b_lin, det_w, vproto,
                               unseen_cls, seen_cls, unused_cls,
                               norm_temperature=norm_temperature, alpha=alpha)
    out = zero_shot_classifier_fwd(x, prep)
    out = jax.block_until_ready(out)
    assert out.shape == (N, C1) and out.dtype == jnp.float32, (out.shape, out.dtype)

    # ---- f32 reference (mirrors the torch forward exactly) --------------------
    h = x @ w_lin.T + b_lin
    h = h / jnp.maximum(jnp.linalg.norm(h, axis=1, keepdims=True), 1e-12)
    scores2 = h @ vproto.T
    ref = h @ det_w
    ref = ref.at[:, unseen_cls].set(
        norm_temperature * (ref[:, unseen_cls] + alpha * scores2[:, unseen_cls]))
    ref = ref.at[:, seen_cls].set(norm_temperature * ref[:, seen_cls])
    ref = ref.at[:, unused_cls].set(norm_temperature * ref[:, unused_cls])

    # ---- bf16-mirrored reference (same dtype pipeline as the kernel) ----------
    scale = jnp.ones((C1,), jnp.float32)
    scale = scale.at[unseen_cls].set(norm_temperature)
    scale = scale.at[seen_cls].set(norm_temperature)
    scale = scale.at[unused_cls].set(norm_temperature)
    amask = jnp.zeros((C1,), jnp.float32).at[unseen_cls].set(
        norm_temperature * alpha)
    vproto_t = jnp.concatenate([vproto.T, jnp.zeros((D, 1), jnp.float32)], axis=1)
    w_comb = det_w * scale[None, :] + vproto_t * amask[None, :]
    hm = jnp.dot(x.astype(jnp.bfloat16), w_lin.T.astype(jnp.bfloat16),
                 preferred_element_type=jnp.float32) + b_lin
    hm = hm * jax.lax.rsqrt(
        jnp.maximum(jnp.sum(hm * hm, axis=-1, keepdims=True), 1e-24))
    mirror = jnp.dot(hm.astype(jnp.bfloat16), w_comb.astype(jnp.bfloat16),
                     preferred_element_type=jnp.float32)

    err_mirror = float(jnp.max(jnp.abs(out - mirror)))
    err_f32 = float(jnp.max(jnp.abs(out - ref)))
    # tight check vs identical bf16 pipeline (validates the kernel itself)
    assert jnp.allclose(out, mirror, atol=2e-2, rtol=2e-3), err_mirror
    # loose check vs full-f32 torch semantics (bf16 MXU quantization tolerance)
    assert jnp.allclose(out, ref, atol=3e-1, rtol=5e-2), err_f32
    print("KERNEL_OK")
</pallas_src>

<mosaic_0001>
module attributes {stable_mosaic.version = 11 : i64} {
  func.func @_zsc_kernel(%arg0: i32, %arg1: i32, %arg2: memref<16x128xbf16, #tpu.memory_space<vmem>>, %arg3: memref<128x128xbf16, #tpu.memory_space<vmem>>, %arg4: memref<1x128xf32, #tpu.memory_space<vmem>>, %arg5: memref<128x128xbf16, #tpu.memory_space<vmem>>, %arg6: memref<16x128xf32, #tpu.memory_space<vmem>>, %arg7: memref<16x128xf32, #tpu.memory_space<vmem>>) attributes {dimension_semantics = [#tpu.dimension_semantics<parallel>, #tpu.dimension_semantics<arbitrary>], iteration_bounds = array<i64: 1, 1>, scalar_prefetch = 0 : i64, scratch_operands = 1 : i64, tpu.core_type = #tpu.core_type<tc>, window_params = [{transform_indices = @transform_0, window_bounds = array<i64: 16, 128>}, {pipeline_mode = #tpu.pipeline_mode<synchronous>, transform_indices = @transform_1, window_bounds = array<i64: 128, 128>}, {pipeline_mode = #tpu.pipeline_mode<synchronous>, transform_indices = @transform_2, window_bounds = array<i64: 1, 128>}, {pipeline_mode = #tpu.pipeline_mode<synchronous>, transform_indices = @transform_3, window_bounds = array<i64: 128, 128>}, {transform_indices = @transform_4, window_bounds = array<i64: 16, 128>}]} {
    %c0_i32 = arith.constant 0 : i32
    %0 = arith.cmpi eq, %arg1, %c0_i32 : i32
    %1 = arith.extui %0 : i1 to i32
    %c0_i32_0 = arith.constant 0 : i32
    %2 = arith.cmpi ne, %1, %c0_i32_0 : i32
    scf.if %2 {
      %cst_10 = arith.constant 0.000000e+00 : f32
      %12 = vector.broadcast %cst_10 : f32 to vector<16x128xf32>
      %c0_11 = arith.constant 0 : index
      %c0_12 = arith.constant 0 : index
      %13 = vector.load %arg7[%c0_11, %c0_12] : memref<16x128xf32, #tpu.memory_space<vmem>>, vector<16x128xf32>
      tpu.vector_store %arg7[%c0_11, %c0_12], %12 {strides = array<i32>} : memref<16x128xf32, #tpu.memory_space<vmem>>, vector<16x128xf32>,
    } else {
    }
    %c0 = arith.constant 0 : index
    %c0_1 = arith.constant 0 : index
    %3 = vector.load %arg7[%c0, %c0_1] : memref<16x128xf32, #tpu.memory_space<vmem>>, vector<16x128xf32>
    %c0_2 = arith.constant 0 : index
    %c0_3 = arith.constant 0 : index
    %4 = vector.load %arg2[%c0_2, %c0_3] : memref<16x128xbf16, #tpu.memory_space<vmem>>, vector<16x128xbf16>
    %c0_4 = arith.constant 0 : index
    %c0_5 = arith.constant 0 : index
    %5 = vector.load %arg3[%c0_4, %c0_5] : memref<128x128xbf16, #tpu.memory_space<vmem>>, vector<128x128xbf16>
    %cst = arith.constant dense<0.000000e+00> : vector<16x128xf32>
    %6 = tpu.matmul %4, %5, %cst {dimension_numbers = #tpu.dot_dimension_numbers<[1], [0], [0], [1], [0, 0, 1, 1], [], []>} : vector<16x128xbf16>, vector<128x128xbf16>, vector<16x128xf32> -> vector<16x128xf32>
    %7 = arith.addf %3, %6 : vector<16x128xf32>
    %c0_6 = arith.constant 0 : index
    %c0_7 = arith.constant 0 : index
    %8 = vector.load %arg7[%c0_6, %c0_7] : memref<16x128xf32, #tpu.memory_space<vmem>>, vector<16x128xf32>
    tpu.vector_store %arg7[%c0_6, %c0_7], %7 {strides = array<i32>} : memref<16x128xf32, #tpu.memory_space<vmem>>, vector<16x128xf32>,
    %c0_i32_8 = arith.constant 0 : i32
    %9 = arith.cmpi eq, %arg1, %c0_i32_8 : i32
    %10 = arith.extui %9 : i1 to i32
    %c0_i32_9 = arith.constant 0 : i32
    %11 = arith.cmpi ne, %10, %c0_i32_9 : i32
    scf.if %11 {
      %c0_10 = arith.constant 0 : index
      %c0_11 = arith.constant 0 : index
      %12 = vector.load %arg7[%c0_10, %c0_11] : memref<16x128xf32, #tpu.memory_space<vmem>>, vector<16x128xf32>
      %c0_12 = arith.constant 0 : index
      %c0_13 = arith.constant 0 : index
      %13 = vector.load %arg4[%c0_12, %c0_13] : memref<1x128xf32, #tpu.memory_space<vmem>>, vector<1x128xf32>
      %14 = vector.broadcast %13 : vector<1x128xf32> to vector<16x128xf32>
      %15 = arith.addf %12, %14 : vector<16x128xf32>
      %16 = arith.mulf %15, %15 : vector<16x128xf32>
      %cst_14 = arith.constant dense<0.000000e+00> : vector<16xf32>
      %17 = vector.multi_reduction <add>, %16, %cst_14 [1] : vector<16x128xf32> to vector<16xf32>
      %18 = vector.shape_cast %17 : vector<16xf32> to vector<16x1xf32>
      %cst_15 = arith.constant 1.000000e-24 : f32
      %19 = vector.broadcast %cst_15 : f32 to vector<16x1xf32>
      %20 = arith.maximumf %18, %19 : vector<16x1xf32>
      %21 = math.rsqrt %20 : vector<16x1xf32>
      %22 = vector.broadcast %21 : vector<16x1xf32> to vector<16x128xf32>
      %23 = arith.mulf %15, %22 : vector<16x128xf32>
      %24 = arith.truncf %23 : vector<16x128xf32> to vector<16x128xbf16>
      %c0_16 = arith.constant 0 : index
      %c0_17 = arith.constant 0 : index
      %25 = vector.load %arg5[%c0_16, %c0_17] : memref<128x128xbf16, #tpu.memory_space<vmem>>, vector<128x128xbf16>
      %cst_18 = arith.constant dense<0.000000e+00> : vector<16x128xf32>
      %26 = tpu.matmul %24, %25, %cst_18 {dimension_numbers = #tpu.dot_dimension_numbers<[1], [0], [0], [1], [0, 0, 1, 1], [], []>} : vector<16x128xbf16>, vector<128x128xbf16>, vector<16x128xf32> -> vector<16x128xf32>
      %c0_19 = arith.constant 0 : index
      %c0_20 = arith.constant 0 : index
      %27 = vector.load %arg6[%c0_19, %c0_20] : memref<16x128xf32, #tpu.memory_space<vmem>>, vector<16x128xf32>
      tpu.vector_store %arg6[%c0_19, %c0_20], %26 {strides = array<i32>} : memref<16x128xf32, #tpu.memory_space<vmem>>, vector<16x128xf32>,
    } else {
    }
    return
  }
  func.func @transform_0(%arg0: i32, %arg1: i32) -> (i32, i32) {
    %c0_i32 = arith.constant 0 : i32
    return %arg0, %arg1 : i32, i32
  }
  func.func @transform_1(%arg0: i32, %arg1: i32) -> (i32, i32) {
    %c0_i32 = arith.constant 0 : i32
    %c0_i32_0 = arith.constant 0 : i32
    return %arg1, %c0_i32 : i32, i32
  }
  func.func @transform_2(%arg0: i32, %arg1: i32) -> (i32, i32) {
    %c0_i32 = arith.constant 0 : i32
    %c0_i32_0 = arith.constant 0 : i32
    %c0_i32_1 = arith.constant 0 : i32
    return %c0_i32, %c0_i32_0 : i32, i32
  }
  func.func @transform_3(%arg0: i32, %arg1: i32) -> (i32, i32) {
    %c0_i32 = arith.constant 0 : i32
    %c0_i32_0 = arith.constant 0 : i32
    %c0_i32_1 = arith.constant 0 : i32
    return %c0_i32, %c0_i32_0 : i32, i32
  }
  func.func @transform_4(%arg0: i32, %arg1: i32) -> (i32, i32) {
    %c0_i32 = arith.constant 0 : i32
    %c0_i32_0 = arith.constant 0 : i32
    return %arg0, %c0_i32 : i32, i32
  }
}

</mosaic_0001>

<llo_original>
// kernel: tpu_custom_call.1
$region0: #{tpu_custom_call.1}
  #allocation0 [shape = 'u32[]', space=smem, size = 0x4, offset = 0x4, fixed_abs, tag = 'smem constant byte address 0x4 - core index']
  #allocation1 [shape = 'u32[144,128]{1,0:T(1,128)}', space=vmem, size = 0x12000, scoped, tag = 'internal scratch']
  #allocation2 [shape = 'f32[16,128]{1,0:T(8,128)}', space=vmem, size = 0x2000, scoped, tag = 'scratch operand']
  %s0 = inlined_call_operand.hbm [shape: bf16[16,128], index: 0, kind: input, shape index: {}]
  %s1 = inlined_call_operand.hbm [shape: bf16[128,128], index: 1, kind: input, shape index: {}]
  %s2 = inlined_call_operand.vmem [shape: f32[1,128], index: 2, kind: input, shape index: {}]
  %s3 = inlined_call_operand.hbm [shape: bf16[128,128], index: 3, kind: input, shape index: {}]
  %s4 = inlined_call_operand.hbm [shape: f32[16,128], index: 4, kind: output, shape index: {}]
  %s5 = sld [smem:[#allocation0]]
  $region46: #{tpu_custom_call.1} parent=0
    _
  %s7 = ssub.s32 1, %s5
  %s8 = scalar_select 0, %s7, %s5
  $region1: #{tpu_custom_call.1} parent=0
    #allocation3 [shape = 'u8[4096]{0}', space=vmem, size = 0x1000, scoped, tag = 'input window, operand 0, single buffered']
    #allocation4 [shape = 's32[1]{0}', space=sflag, size = 0x4, scoped, tag = 'scoped memory for tpu_custom_call.1']
    #allocation5 [shape = 's32[1]{0}', space=sflag, size = 0x4, scoped, tag = 'scoped memory for tpu_custom_call.1']
    #allocation6 [shape = 'u8[32768]{0}', space=vmem, size = 0x8000, scoped, tag = 'input window, operand 1, single buffered']
    #allocation7 [shape = 's32[1]{0}', space=sflag, size = 0x4, scoped, tag = 'scoped memory for tpu_custom_call.1']
    #allocation8 [shape = 'u8[32768]{0}', space=vmem, size = 0x8000, scoped, tag = 'input window, operand 3, single buffered']
    #allocation9 [shape = 'u8[8192]{0}', space=vmem, size = 0x2000, scoped, tag = 'output window, operand 0, single buffered']
    %9 = vsyncpa [#allocation4], 0
    %10 = vsyncpa [#allocation7], 0
    %11 = vsyncpa [#allocation5], 0
    // Predicated region
    $region2: #{tpu_custom_call.1} parent=1 // pred_check
      _
    $region3: #{tpu_custom_call.1} parent=1 // pred_check_branch
      %13 = sbr.rel (0) target = $region5
    $region4: #{tpu_custom_call.1} parent=1 // pred_region
      %s15 = ssub.s32 128, 128
      %16 = vsyncadd [#allocation4], %s15
      %s17 = sshll.u32 [#allocation3], 4
      %s18 = int_to_ptr.vmem [resolvable:$true] %s17
      %23 = dma.hbm_to_vmem [thread:$0]  %s0, 128, %s18, [#allocation4], 64, 64, 4
    $region5: #{tpu_custom_call.1} parent=1 // pred_fallthru
      _
    // Predicated region
    $region6: #{tpu_custom_call.1} parent=1 // pred_check
      _
    $region7: #{tpu_custom_call.1} parent=1 // pred_check_branch
      %25 = sbr.rel (0) target = $region9
    $region8: #{tpu_custom_call.1} parent=1 // pred_region
      %s27 = ssub.s32 1024, 1024
      %28 = vsyncadd [#allocation7], %s27
      %s29 = sshll.u32 [#allocation6], 4
      %s30 = int_to_ptr.vmem [resolvable:$true] %s29
      %35 = dma.hbm_to_vmem [thread:$0]  %s1, 1024, %s30, [#allocation7], 64, 64, 4
    $region9: #{tpu_custom_call.1} parent=1 // pred_fallthru
      _
    // Predicated region
    $region10: #{tpu_custom_call.1} parent=1 // pred_check
      _
    $region11: #{tpu_custom_call.1} parent=1 // pred_check_branch
      %37 = sbr.rel (0) target = $region13
    $region12: #{tpu_custom_call.1} parent=1 // pred_region
      _
    $region13: #{tpu_custom_call.1} parent=1 // pred_fallthru
      _
    // Predicated region
    $region14: #{tpu_custom_call.1} parent=1 // pred_check
      _
    $region15: #{tpu_custom_call.1} parent=1 // pred_check_branch
      %39 = sbr.rel (0) target = $region17
    $region16: #{tpu_custom_call.1} parent=1 // pred_region
      %s41 = ssub.s32 1024, 1024
      %42 = vsyncadd [#allocation7], %s41
      %s43 = sshll.u32 [#allocation8], 4
      %s44 = int_to_ptr.vmem [resolvable:$true] %s43
      %49 = dma.hbm_to_vmem [thread:$0]  %s3, 1024, %s44, [#allocation7], 64, 64, 4
    $region17: #{tpu_custom_call.1} parent=1 // pred_fallthru
      _
    // Predicated region
    $region18: #{tpu_custom_call.1} parent=1 // pred_check
      _
    $region19: #{tpu_custom_call.1} parent=1 // pred_check_branch
      %51 = sbr.rel (0) target = $region21
    $region20: #{tpu_custom_call.1} parent=1 // pred_region
      %52 = dma.done [#allocation4], 128
    $region21: #{tpu_custom_call.1} parent=1 // pred_fallthru
      _
    // Predicated region
    $region22: #{tpu_custom_call.1} parent=1 // pred_check
      _
    $region23: #{tpu_custom_call.1} parent=1 // pred_check_branch
      %54 = sbr.rel (0) target = $region25
    $region24: #{tpu_custom_call.1} parent=1 // pred_region
      %55 = dma.done [#allocation7], 1024
    $region25: #{tpu_custom_call.1} parent=1 // pred_fallthru
      _
    // Predicated region
    $region26: #{tpu_custom_call.1} parent=1 // pred_check
      _
    $region27: #{tpu_custom_call.1} parent=1 // pred_check_branch
      %57 = sbr.rel (0) target = $region29
    $region28: #{tpu_custom_call.1} parent=1 // pred_region
      %58 = dma.done [#allocation7], 1024
    $region29: #{tpu_custom_call.1} parent=1 // pred_fallthru
      _
    %p60 = scmp.eq.s32.totalorder 0, 0
    // Predicated region
    $region30: #{tpu_custom_call.1} parent=1 // pred_check
      %p61 = pneg %p60
    $region31: #{tpu_custom_call.1} parent=1 // pred_check_branch
      %63 = sbr.rel (%p61) target = $region33
    $region32: #{tpu_custom_call.1} parent=1 // pred_region
      %64 = vst [vmem:[#allocation2] sm:$0xff] 0.0
      %65 = vst [vmem:[#allocation2 + $0x8] sm:$0xff] 0.0
    $region33: #{tpu_custom_call.1} parent=1 // pred_fallthru
      _
    %v66 = vld [vmem:[#allocation2] sm:$0xff]
    %v67 = vld [vmem:[#allocation2 + $0x8] sm:$0xff]
    %v68 = vld [vmem:[#allocation3] sm:$0xf]
    %v69 = vld [vmem:[#allocation3 + $0x4] sm:$0xf]
    %v70 = vld [vmem:[#allocation6] sm:$0xf]
    %v71 = vld [vmem:[#allocation6 + $0x4] sm:$0xf]
    %v72 = vld [vmem:[#allocation6 + $0x8] sm:$0xf]
    %v73 = vld [vmem:[#allocation6 + $0xc] sm:$0xf]
    %v74 = vld [vmem:[#allocation6 + $0x10] sm:$0xf]
    %v75 = vld [vmem:[#allocation6 + $0x14] sm:$0xf]
    %v76 = vld [vmem:[#allocation6 + $0x18] sm:$0xf]
    %v77 = vld [vmem:[#allocation6 + $0x1c] sm:$0xf]
    %v78 = vld [vmem:[#allocation6 + $0x20] sm:$0xf]
    %v79 = vld [vmem:[#allocation6 + $0x24] sm:$0xf]
    %v80 = vld [vmem:[#allocation6 + $0x28] sm:$0xf]
    %v81 = vld [vmem:[#allocation6 + $0x2c] sm:$0xf]
    %v82 = vld [vmem:[#allocation6 + $0x30] sm:$0xf]
    %v83 = vld [vmem:[#allocation6 + $0x34] sm:$0xf]
    %v84 = vld [vmem:[#allocation6 + $0x38] sm:$0xf]
    %v85 = vld [vmem:[#allocation6 + $0x3c] sm:$0xf]
    %v88 = vunpack.c.l.b16 %v68
    %v89 = vunpack.c.l.b16 %v69
    %v90 = vpack.c.b16 %v89, %v88
    %v108 = vunpack.c.l.b16 %v70
    %v109 = vunpack.c.l.b16 %v71
    %v110 = vunpack.c.l.b16 %v72
    %v111 = vunpack.c.l.b16 %v73
    %v112 = vunpack.c.l.b16 %v74
    %v113 = vunpack.c.l.b16 %v75
    %v114 = vunpack.c.l.b16 %v76
    %v115 = vunpack.c.l.b16 %v77
    %v116 = vunpack.c.l.b16 %v78
    %v117 = vunpack.c.l.b16 %v79
    %v118 = vunpack.c.l.b16 %v80
    %v119 = vunpack.c.l.b16 %v81
    %v120 = vunpack.c.l.b16 %v82
    %v121 = vunpack.c.l.b16 %v83
    %v122 = vunpack.c.l.b16 %v84
    %v123 = vunpack.c.l.b16 %v85
    %v124 = vpack.c.b16 %v109, %v108
    %v125 = vpack.c.b16 %v111, %v110
    %v126 = vpack.c.b16 %v113, %v112
    %v127 = vpack.c.b16 %v115, %v114
    %v128 = vpack.c.b16 %v117, %v116
    %v129 = vpack.c.b16 %v119, %v118
    %v130 = vpack.c.b16 %v121, %v120
    %v131 = vpack.c.b16 %v123, %v122
    %140 = vmatprep.subr.bf16.mxu0 0
    %141 = vmatpush1.bf16.msra.mxu0 %v131
    %142 = vmatprep.subr.bf16.mxu0 0
    %143 = vmatpush1.bf16.msra.mxu0 %v130
    %144 = vmatprep.subr.bf16.mxu0 0
    %145 = vmatpush1.bf16.msra.mxu0 %v129
    %146 = vmatprep.subr.bf16.mxu0 0
    %147 = vmatpush1.bf16.msra.mxu0 %v128
    %148 = vmatprep.subr.bf16.mxu0 0
    %149 = vmatpush1.bf16.msra.mxu0 %v127
    %150 = vmatprep.subr.bf16.mxu0 0
    %151 = vmatpush1.bf16.msra.mxu0 %v126
    %152 = vmatprep.subr.bf16.mxu0 0
    %153 = vmatpush1.bf16.msra.mxu0 %v125
    %154 = vmatprep.subr.bf16.mxu0 0
    %155 = vmatpush1.bf16.msra.mxu0 %v124
    %156 = vmatprep.subr.bf16.mxu0 0
    %157 = vmatpush2.bf16.msra.mxu0 0
    %158 = vmatprep.subr.bf16.mxu0 0
    %159 = vmatpush2.bf16.msra.mxu0 0
    %160 = vmatprep.subr.bf16.mxu0 0
    %161 = vmatpush2.bf16.msra.mxu0 0
    %162 = vmatprep.subr.bf16.mxu0 0
    %163 = vmatpush2.bf16.msra.mxu0 0
    %164 = vmatprep.subr.bf16.mxu0 0
    %165 = vmatpush2.bf16.msra.mxu0 0
    %166 = vmatprep.subr.bf16.mxu0 0
    %167 = vmatpush2.bf16.msra.mxu0 0
    %168 = vmatprep.subr.bf16.mxu0 0
    %169 = vmatpush2.bf16.msra.mxu0 0
    %170 = vmatprep.subr.bf16.mxu0 0
    %171 = vmatpush2.bf16.msra.mxu0 0
    %172 = vmatprep.mubr.bf16.mxu0 0
    %173 = vmatmul.mubr.bf16.gmra.mxu0 %v90
    %v174 = vpop.f32.mrf.mxu0
    %v175 = vadd.f32 0.0, %v174
    %v176 = vpop.f32.mrf.mxu0
    %v177 = vpop.f32.mrf.mxu0
    %v178 = vadd.f32 0.0, %v177
    %v179 = vpop.f32.mrf.mxu0
    %180 = vdwg.mxu0
    %v181 = vadd.f32 %v66, %v175
    %v182 = vadd.f32 %v67, %v178
    %183 = vst [vmem:[#allocation2] sm:$0xff] %v181
    %184 = vst [vmem:[#allocation2 + $0x8] sm:$0xff] %v182
    // Predicated region
    $region34: #{tpu_custom_call.1} parent=1 // pred_check
      %p185 = pneg %p60
    $region35: #{tpu_custom_call.1} parent=1 // pred_check_branch
      %187 = sbr.rel (%p185) target = $region37
    $region36: #{tpu_custom_call.1} parent=1 // pred_region
      %v188 = vld [vmem:[#allocation2] sm:$0xff]
      %v189 = vld [vmem:[#allocation2 + $0x8] sm:$0xff]
      %v190 = vld [vmem:[%s2] sm:$0x1]
      %v192 = vlaneseq
      %v193 = vshrl.u32 %v192, 7
      %v194 = vsub.s32 0, %v193
      %v195 = vrot.slane %v190, %v194
      %v197 = vadd.f32 %v188, %v195
      %v198 = vadd.f32 %v189, %v195
      %v199 = vmul.f32 %v197, %v197
      %v200 = vmul.f32 %v198, %v198
      %201 = vadd.xlane.f32.xlu0 %v199
      %v202 = vpop.xlane.xlu0 %201
      %203 = vadd.xlane.f32.xlu0 %v200
      %v204 = vpop.xlane.xlu0 %203
      %v205 = vmax.f32 %v202, 1e-24
      %v206 = vmax.f32 %v204, 1e-24
      %v207 = vrsqrt.pop %v205
      %v208 = vrsqrt.pop %v206
      %v209 = vmul.f32 %v197, %v207
      %v210 = vmul.f32 %v198, %v208
      %v211 = vpack.c.bf16 %v210, %v209
      %v212 = vld [vmem:[#allocation8] sm:$0xf]
      %v213 = vld [vmem:[#allocation8 + $0x4] sm:$0xf]
      %v214 = vld [vmem:[#allocation8 + $0x8] sm:$0xf]
      %v215 = vld [vmem:[#allocation8 + $0xc] sm:$0xf]
      %v216 = vld [vmem:[#allocation8 + $0x10] sm:$0xf]
      %v217 = vld [vmem:[#allocation8 + $0x14] sm:$0xf]
      %v218 = vld [vmem:[#allocation8 + $0x18] sm:$0xf]
      %v219 = vld [vmem:[#allocation8 + $0x1c] sm:$0xf]
      %v220 = vld [vmem:[#allocation8 + $0x20] sm:$0xf]
      %v221 = vld [vmem:[#allocation8 + $0x24] sm:$0xf]
      %v222 = vld [vmem:[#allocation8 + $0x28] sm:$0xf]
      %v223 = vld [vmem:[#allocation8 + $0x2c] sm:$0xf]
      %v224 = vld [vmem:[#allocation8 + $0x30] sm:$0xf]
      %v225 = vld [vmem:[#allocation8 + $0x34] sm:$0xf]
      %v226 = vld [vmem:[#allocation8 + $0x38] sm:$0xf]
      %v227 = vld [vmem:[#allocation8 + $0x3c] sm:$0xf]
      %v244 = vunpack.c.l.b16 %v212
      %v245 = vunpack.c.l.b16 %v213
      %v246 = vunpack.c.l.b16 %v214
      %v247 = vunpack.c.l.b16 %v215
      %v248 = vunpack.c.l.b16 %v216
      %v249 = vunpack.c.l.b16 %v217
      %v250 = vunpack.c.l.b16 %v218
      %v251 = vunpack.c.l.b16 %v219
      %v252 = vunpack.c.l.b16 %v220
      %v253 = vunpack.c.l.b16 %v221
      %v254 = vunpack.c.l.b16 %v222
      %v255 = vunpack.c.l.b16 %v223
      %v256 = vunpack.c.l.b16 %v224
      %v257 = vunpack.c.l.b16 %v225
      %v258 = vunpack.c.l.b16 %v226
      %v259 = vunpack.c.l.b16 %v227
      %v260 = vpack.c.b16 %v245, %v244
      %v261 = vpack.c.b16 %v247, %v246
      %v262 = vpack.c.b16 %v249, %v248
      %v263 = vpack.c.b16 %v251, %v250
      %v264 = vpack.c.b16 %v253, %v252
      %v265 = vpack.c.b16 %v255, %v254
      %v266 = vpack.c.b16 %v257, %v256
      %v267 = vpack.c.b16 %v259, %v258
      %276 = vmatprep.subr.bf16.mxu0 0
      %277 = vmatpush1.bf16.msra.mxu0 %v267
      %278 = vmatprep.subr.bf16.mxu0 0
      %279 = vmatpush1.bf16.msra.mxu0 %v266
      %280 = vmatprep.subr.bf16.mxu0 0
      %281 = vmatpush1.bf16.msra.mxu0 %v265
      %282 = vmatprep.subr.bf16.mxu0 0
      %283 = vmatpush1.bf16.msra.mxu0 %v264
      %284 = vmatprep.subr.bf16.mxu0 0
      %285 = vmatpush1.bf16.msra.mxu0 %v263
      %286 = vmatprep.subr.bf16.mxu0 0
      %287 = vmatpush1.bf16.msra.mxu0 %v262
      %288 = vmatprep.subr.bf16.mxu0 0
      %289 = vmatpush1.bf16.msra.mxu0 %v261
      %290 = vmatprep.subr.bf16.mxu0 0
      %291 = vmatpush1.bf16.msra.mxu0 %v260
      %292 = vmatprep.subr.bf16.mxu0 0
      %293 = vmatpush2.bf16.msra.mxu0 0
      %294 = vmatprep.subr.bf16.mxu0 0
      %295 = vmatpush2.bf16.msra.mxu0 0
      %296 = vmatprep.subr.bf16.mxu0 0
      %297 = vmatpush2.bf16.msra.mxu0 0
      %298 = vmatprep.subr.bf16.mxu0 0
      %299 = vmatpush2.bf16.msra.mxu0 0
      %300 = vmatprep.subr.bf16.mxu0 0
      %301 = vmatpush2.bf16.msra.mxu0 0
      %302 = vmatprep.subr.bf16.mxu0 0
      %303 = vmatpush2.bf16.msra.mxu0 0
      %304 = vmatprep.subr.bf16.mxu0 0
      %305 = vmatpush2.bf16.msra.mxu0 0
      %306 = vmatprep.subr.bf16.mxu0 0
      %307 = vmatpush2.bf16.msra.mxu0 0
      %308 = vmatprep.mubr.bf16.mxu0 0
      %309 = vmatmul.mubr.bf16.gmra.mxu0 %v211
      %v310 = vpop.f32.mrf.mxu0
      %v311 = vadd.f32 0.0, %v310
      %v312 = vpop.f32.mrf.mxu0
      %v313 = vpop.f32.mrf.mxu0
      %v314 = vadd.f32 0.0, %v313
      %v315 = vpop.f32.mrf.mxu0
      %316 = vdwg.mxu0
      %317 = vst [vmem:[#allocation9] sm:$0xff] %v311
      %318 = vst [vmem:[#allocation9 + $0x8] sm:$0xff] %v314
    $region37: #{tpu_custom_call.1} parent=1 // pred_fallthru
      _
    // Predicated region
    $region38: #{tpu_custom_call.1} parent=1 // pred_check
      _
    $region39: #{tpu_custom_call.1} parent=1 // pred_check_branch
      %320 = sbr.rel (0) target = $region41
    $region40: #{tpu_custom_call.1} parent=1 // pred_region
      %s322 = ssub.s32 256, 256
      %323 = vsyncadd [#allocation5], %s322
      %s324 = sshll.u32 [#allocation9], 4
      %s325 = int_to_ptr.vmem [resolvable:$true] %s324
      %330 = dma.vmem_to_hbm [thread:$0]  %s325, 256, %s4, [#allocation5], 128, 128, 8
    $region41: #{tpu_custom_call.1} parent=1 // pred_fallthru
      _
    // Predicated region
    $region42: #{tpu_custom_call.1} parent=1 // pred_check
      _
    $region43: #{tpu_custom_call.1} parent=1 // pred_check_branch
      %332 = sbr.rel (0) target = $region45
    $region44: #{tpu_custom_call.1} parent=1 // pred_region
      %333 = dma.done [#allocation5], 256
    $region45: #{tpu_custom_call.1} parent=1 // pred_fallthru
      _
    %334 = vsyncpa [#allocation4], 1
    %335 = vsyncpa [#allocation7], 1
    %336 = vsyncpa [#allocation5], 1

</llo_original>
